<compile_context>
chip_gen: v7x
topology: tpu7x:2x2x1
jax: 0.10.0
libtpu: 0.0.40
codegen_flags: <defaults>
</compile_context>

<pallas_src>
import jax
import jax.numpy as jnp
from jax.experimental import pallas as pl
from jax.experimental.pallas import tpu as pltpu

HIDDEN = 128
LN_EPS = 1e-5      # PyTorch nn.LayerNorm default
TM_MAX = 1024      # rows per grid step; ~1.5 MiB/step VMEM -> safe on all gens


def _round_up(x, m):
    return ((x + m - 1) // m) * m


def _layernorm(h, gamma, beta):
    # LayerNorm over the feature axis, biased variance (PyTorch semantics).
    mean = jnp.mean(h, axis=-1, keepdims=True)
    centered = h - mean
    var = jnp.mean(centered * centered, axis=-1, keepdims=True)
    return centered * jax.lax.rsqrt(var + LN_EPS) * gamma + beta


def actor_kernel(x_ref, w1_ref, w2_ref, w3_ref, vec_ref, o_ref):
    x = x_ref[...]
    adim = w3_ref.shape[1]          # static (block == full w3)

    # Packed per-feature vectors (one DMA): rows b1, g1, be1, b2, g2, be2, b3.
    b1 = vec_ref[0:1, :]
    g1 = vec_ref[1:2, :]
    be1 = vec_ref[2:3, :]
    b2 = vec_ref[3:4, :]
    g2 = vec_ref[4:5, :]
    be2 = vec_ref[5:6, :]
    b3 = vec_ref[6:7, :adim]

    # --- Layer 1: Linear -> LayerNorm -> ReLU ---
    h1 = jnp.dot(x, w1_ref[...], preferred_element_type=jnp.float32) + b1
    h1 = jnp.maximum(_layernorm(h1, g1, be1), 0.0)

    # --- Layer 2: Linear -> LayerNorm -> ReLU ---
    h2 = jnp.dot(h1, w2_ref[...], preferred_element_type=jnp.float32) + b2
    h2 = jnp.maximum(_layernorm(h2, g2, be2), 0.0)

    # --- Output layer: Linear -> Tanh (written directly at action_dim width) ---
    out = jnp.dot(h2, w3_ref[...], preferred_element_type=jnp.float32) + b3
    o_ref[...] = jnp.tanh(out)


def pack_params(params):
    """Pack raw params into kernel operands (arrays only -> jit-friendly pytree)."""
    action_dim = params["w3"].shape[1]
    assert action_dim <= HIDDEN, "b3 packing assumes action_dim <= 128"

    vecs = jnp.zeros((8, HIDDEN), jnp.float32)
    for row, name in enumerate(("b1", "g1", "be1", "b2", "g2", "be2")):
        vecs = vecs.at[row, :].set(params[name].reshape(-1))
    vecs = vecs.at[6, :action_dim].set(params["b3"].reshape(-1))

    return {
        "w1": params["w1"].astype(jnp.float32),
        "w2": params["w2"].astype(jnp.float32),
        "w3": params["w3"].astype(jnp.float32),
        "vecs": vecs,
    }


def _pick_tile(B):
    """Rows per grid step + number of steps (all static Python ints)."""
    bp = _round_up(B, 8)
    if bp <= 512:
        return bp, 1                     # one tile; step overhead dominates otherwise
    n_steps = pl.cdiv(bp, TM_MAX)
    if n_steps % 2:
        n_steps += 1                     # even step count -> balanced on v7x's 2 TCs
    tm = _round_up(pl.cdiv(bp, n_steps), 8)
    return tm, pl.cdiv(B, tm)


@jax.jit
def actor_forward(x, packed):
    """x: (B, num_inputs) f32 -> (B, action_dim) f32."""
    B, num_inputs = x.shape
    action_dim = packed["w3"].shape[1]
    tm, steps = _pick_tile(B)

    return pl.pallas_call(
        actor_kernel,
        out_shape=jax.ShapeDtypeStruct((B, action_dim), jnp.float32),
        grid=(steps,),
        in_specs=[
            pl.BlockSpec((tm, num_inputs), lambda i: (i, 0)),       # x: streamed
            pl.BlockSpec((num_inputs, HIDDEN), lambda i: (0, 0)),   # w1: resident
            pl.BlockSpec((HIDDEN, HIDDEN), lambda i: (0, 0)),       # w2: resident
            pl.BlockSpec((HIDDEN, action_dim), lambda i: (0, 0)),   # w3: resident
            pl.BlockSpec((8, HIDDEN), lambda i: (0, 0)),            # packed vecs+b3
        ],
        out_specs=pl.BlockSpec((tm, action_dim), lambda i: (i, 0)), # o: streamed
        compiler_params=pltpu.CompilerParams(
            dimension_semantics=("parallel",)),
    )(x, packed["w1"], packed["w2"], packed["w3"], packed["vecs"])


def init_params(key, num_inputs, action_dim):
    """Deterministic init mirroring the PyTorch module's shapes.

    fan_init_weights(tensor): uniform(-1/sqrt(size(-1)), 1/sqrt(size(-1))).
    PyTorch Linear weight is (out, in); here we store the transpose (in, out)
    so the kernel can do x @ W directly.
    """
    ks = jax.random.split(key, 8)

    def fan_uniform(k, shape, fan):
        v = 1.0 / jnp.sqrt(jnp.float32(fan))
        return jax.random.uniform(k, shape, jnp.float32, -v, v)

    params = {}
    # Layer 0: Linear(num_inputs, 128) -- fan_init on weight and bias.
    params["w1"] = fan_uniform(ks[0], (num_inputs, HIDDEN), num_inputs)
    params["b1"] = fan_uniform(ks[1], (1, HIDDEN), HIDDEN)
    # LayerNorm(128) default init: weight=1, bias=0.
    params["g1"] = jnp.ones((1, HIDDEN), jnp.float32)
    params["be1"] = jnp.zeros((1, HIDDEN), jnp.float32)

    # Layer 3: Linear(128, 128) -- fan_init (fan=128).
    params["w2"] = fan_uniform(ks[2], (HIDDEN, HIDDEN), HIDDEN)
    params["b2"] = fan_uniform(ks[3], (1, HIDDEN), HIDDEN)
    params["g2"] = jnp.ones((1, HIDDEN), jnp.float32)
    params["be2"] = jnp.zeros((1, HIDDEN), jnp.float32)

    # Layer 5: Linear(128, action_dim) -- PyTorch default init.
    params["w3"] = fan_uniform(ks[4], (HIDDEN, action_dim), HIDDEN)
    params["b3"] = fan_uniform(ks[5], (1, action_dim), HIDDEN)
    return params
    # TODO(synk): add_noise() (training-time parameter perturbation) is not part
    # of forward and is left to the host-side param update, not the kernel.


def actor_reference(x, p):
    """Pure-JAX reference for correctness check."""
    def ln(h, g, b):
        m = jnp.mean(h, -1, keepdims=True)
        c = h - m
        v = jnp.mean(c * c, -1, keepdims=True)
        return c / jnp.sqrt(v + LN_EPS) * g + b

    h = jnp.maximum(ln(x @ p["w1"] + p["b1"], p["g1"], p["be1"]), 0.0)
    h = jnp.maximum(ln(h @ p["w2"] + p["b2"], p["g2"], p["be2"]), 0.0)
    return jnp.tanh(h @ p["w3"] + p["b3"])


if __name__ == "__main__":
    key = jax.random.PRNGKey(0)
    k_x, k_x2, k_p = jax.random.split(key, 3)

    num_inputs = 32     # observation dim
    action_dim = 4      # action_space.shape[0]

    params = init_params(k_p, num_inputs, action_dim)
    packed = pack_params(params)

    # Small inference-style batch (single grid step, whole batch in one tile).
    batch = 8
    x = jax.random.normal(k_x, (batch, num_inputs), jnp.float32)
    out = jax.block_until_ready(actor_forward(x, packed))
    ref = actor_reference(x, params)
    assert out.shape == (batch, action_dim)
    assert jnp.allclose(out, ref, atol=1e-5, rtol=1e-5), (
        f"mismatch (B=8): max abs err {jnp.max(jnp.abs(out - ref))}")

    # Larger ragged batch: exercises the 2-step grid + partial boundary tile.
    batch2 = 1029
    x2 = jax.random.normal(k_x2, (batch2, num_inputs), jnp.float32)
    out2 = jax.block_until_ready(actor_forward(x2, packed))
    ref2 = actor_reference(x2, params)
    assert out2.shape == (batch2, action_dim)
    assert jnp.allclose(out2, ref2, atol=1e-5, rtol=1e-5), (
        f"mismatch (B=1029): max abs err {jnp.max(jnp.abs(out2 - ref2))}")

    print("KERNEL_OK")
</pallas_src>

<mosaic_0001>
module attributes {stable_mosaic.version = 11 : i64} {
  func.func @actor_kernel(%arg0: i32, %arg1: memref<8x32xf32, #tpu.memory_space<vmem>>, %arg2: memref<32x128xf32, #tpu.memory_space<vmem>>, %arg3: memref<128x128xf32, #tpu.memory_space<vmem>>, %arg4: memref<128x4xf32, #tpu.memory_space<vmem>>, %arg5: memref<8x128xf32, #tpu.memory_space<vmem>>, %arg6: memref<8x4xf32, #tpu.memory_space<vmem>>) attributes {dimension_semantics = [#tpu.dimension_semantics<parallel>], iteration_bounds = array<i64: 1>, scalar_prefetch = 0 : i64, scratch_operands = 0 : i64, tpu.core_type = #tpu.core_type<tc>, window_params = [{transform_indices = @transform_0, window_bounds = array<i64: 8, 32>}, {pipeline_mode = #tpu.pipeline_mode<synchronous>, transform_indices = @transform_1, window_bounds = array<i64: 32, 128>}, {pipeline_mode = #tpu.pipeline_mode<synchronous>, transform_indices = @transform_2, window_bounds = array<i64: 128, 128>}, {pipeline_mode = #tpu.pipeline_mode<synchronous>, transform_indices = @transform_3, window_bounds = array<i64: 128, 4>}, {pipeline_mode = #tpu.pipeline_mode<synchronous>, transform_indices = @transform_4, window_bounds = array<i64: 8, 128>}, {transform_indices = @transform_5, window_bounds = array<i64: 8, 4>}]} {
    %c0 = arith.constant 0 : index
    %c0_0 = arith.constant 0 : index
    %0 = vector.load %arg1[%c0, %c0_0] : memref<8x32xf32, #tpu.memory_space<vmem>>, vector<8x32xf32>
    %c0_1 = arith.constant 0 : index
    %c0_2 = arith.constant 0 : index
    %1 = vector.load %arg5[%c0_1, %c0_2] : memref<8x128xf32, #tpu.memory_space<vmem>>, vector<1x128xf32>
    %c1 = arith.constant 1 : index
    %c0_3 = arith.constant 0 : index
    %2 = vector.load %arg5[%c1, %c0_3] : memref<8x128xf32, #tpu.memory_space<vmem>>, vector<1x128xf32>
    %c2 = arith.constant 2 : index
    %c0_4 = arith.constant 0 : index
    %3 = vector.load %arg5[%c2, %c0_4] : memref<8x128xf32, #tpu.memory_space<vmem>>, vector<1x128xf32>
    %c3 = arith.constant 3 : index
    %c0_5 = arith.constant 0 : index
    %4 = vector.load %arg5[%c3, %c0_5] : memref<8x128xf32, #tpu.memory_space<vmem>>, vector<1x128xf32>
    %c4 = arith.constant 4 : index
    %c0_6 = arith.constant 0 : index
    %5 = vector.load %arg5[%c4, %c0_6] : memref<8x128xf32, #tpu.memory_space<vmem>>, vector<1x128xf32>
    %c5 = arith.constant 5 : index
    %c0_7 = arith.constant 0 : index
    %6 = vector.load %arg5[%c5, %c0_7] : memref<8x128xf32, #tpu.memory_space<vmem>>, vector<1x128xf32>
    %c6 = arith.constant 6 : index
    %c0_8 = arith.constant 0 : index
    %7 = vector.load %arg5[%c6, %c0_8] : memref<8x128xf32, #tpu.memory_space<vmem>>, vector<1x4xf32>
    %c0_9 = arith.constant 0 : index
    %c0_10 = arith.constant 0 : index
    %8 = vector.load %arg2[%c0_9, %c0_10] : memref<32x128xf32, #tpu.memory_space<vmem>>, vector<32x128xf32>
    %cst = arith.constant dense<0.000000e+00> : vector<8x128xf32>
    %9 = tpu.matmul %0, %8, %cst {dimension_numbers = #tpu.dot_dimension_numbers<[1], [0], [0], [1], [0, 0, 1, 1], [], []>} : vector<8x32xf32>, vector<32x128xf32>, vector<8x128xf32> -> vector<8x128xf32>
    %10 = vector.broadcast %1 : vector<1x128xf32> to vector<8x128xf32>
    %11 = arith.addf %9, %10 : vector<8x128xf32>
    %cst_11 = arith.constant dense<0.000000e+00> : vector<8xf32>
    %12 = vector.multi_reduction <add>, %11, %cst_11 [1] : vector<8x128xf32> to vector<8xf32>
    %13 = vector.shape_cast %12 : vector<8xf32> to vector<8x1xf32>
    %cst_12 = arith.constant 1.280000e+02 : f32
    %14 = vector.broadcast %cst_12 : f32 to vector<8x1xf32>
    %15 = arith.divf %13, %14 : vector<8x1xf32>
    %16 = vector.broadcast %15 : vector<8x1xf32> to vector<8x128xf32>
    %17 = arith.subf %11, %16 : vector<8x128xf32>
    %18 = arith.mulf %17, %17 : vector<8x128xf32>
    %cst_13 = arith.constant dense<0.000000e+00> : vector<8xf32>
    %19 = vector.multi_reduction <add>, %18, %cst_13 [1] : vector<8x128xf32> to vector<8xf32>
    %20 = vector.shape_cast %19 : vector<8xf32> to vector<8x1xf32>
    %cst_14 = arith.constant 1.280000e+02 : f32
    %21 = vector.broadcast %cst_14 : f32 to vector<8x1xf32>
    %22 = arith.divf %20, %21 : vector<8x1xf32>
    %cst_15 = arith.constant 9.99999974E-6 : f32
    %23 = vector.broadcast %cst_15 : f32 to vector<8x1xf32>
    %24 = arith.addf %22, %23 : vector<8x1xf32>
    %25 = math.rsqrt %24 : vector<8x1xf32>
    %26 = vector.broadcast %25 : vector<8x1xf32> to vector<8x128xf32>
    %27 = arith.mulf %17, %26 : vector<8x128xf32>
    %28 = vector.broadcast %2 : vector<1x128xf32> to vector<8x128xf32>
    %29 = arith.mulf %27, %28 : vector<8x128xf32>
    %30 = vector.broadcast %3 : vector<1x128xf32> to vector<8x128xf32>
    %31 = arith.addf %29, %30 : vector<8x128xf32>
    %cst_16 = arith.constant 0.000000e+00 : f32
    %32 = vector.broadcast %cst_16 : f32 to vector<8x128xf32>
    %33 = arith.maximumf %31, %32 : vector<8x128xf32>
    %c0_17 = arith.constant 0 : index
    %c0_18 = arith.constant 0 : index
    %34 = vector.load %arg3[%c0_17, %c0_18] : memref<128x128xf32, #tpu.memory_space<vmem>>, vector<128x128xf32>
    %cst_19 = arith.constant dense<0.000000e+00> : vector<8x128xf32>
    %35 = tpu.matmul %33, %34, %cst_19 {dimension_numbers = #tpu.dot_dimension_numbers<[1], [0], [0], [1], [0, 0, 1, 1], [], []>} : vector<8x128xf32>, vector<128x128xf32>, vector<8x128xf32> -> vector<8x128xf32>
    %36 = vector.broadcast %4 : vector<1x128xf32> to vector<8x128xf32>
    %37 = arith.addf %35, %36 : vector<8x128xf32>
    %cst_20 = arith.constant dense<0.000000e+00> : vector<8xf32>
    %38 = vector.multi_reduction <add>, %37, %cst_20 [1] : vector<8x128xf32> to vector<8xf32>
    %39 = vector.shape_cast %38 : vector<8xf32> to vector<8x1xf32>
    %cst_21 = arith.constant 1.280000e+02 : f32
    %40 = vector.broadcast %cst_21 : f32 to vector<8x1xf32>
    %41 = arith.divf %39, %40 : vector<8x1xf32>
    %42 = vector.broadcast %41 : vector<8x1xf32> to vector<8x128xf32>
    %43 = arith.subf %37, %42 : vector<8x128xf32>
    %44 = arith.mulf %43, %43 : vector<8x128xf32>
    %cst_22 = arith.constant dense<0.000000e+00> : vector<8xf32>
    %45 = vector.multi_reduction <add>, %44, %cst_22 [1] : vector<8x128xf32> to vector<8xf32>
    %46 = vector.shape_cast %45 : vector<8xf32> to vector<8x1xf32>
    %cst_23 = arith.constant 1.280000e+02 : f32
    %47 = vector.broadcast %cst_23 : f32 to vector<8x1xf32>
    %48 = arith.divf %46, %47 : vector<8x1xf32>
    %cst_24 = arith.constant 9.99999974E-6 : f32
    %49 = vector.broadcast %cst_24 : f32 to vector<8x1xf32>
    %50 = arith.addf %48, %49 : vector<8x1xf32>
    %51 = math.rsqrt %50 : vector<8x1xf32>
    %52 = vector.broadcast %51 : vector<8x1xf32> to vector<8x128xf32>
    %53 = arith.mulf %43, %52 : vector<8x128xf32>
    %54 = vector.broadcast %5 : vector<1x128xf32> to vector<8x128xf32>
    %55 = arith.mulf %53, %54 : vector<8x128xf32>
    %56 = vector.broadcast %6 : vector<1x128xf32> to vector<8x128xf32>
    %57 = arith.addf %55, %56 : vector<8x128xf32>
    %cst_25 = arith.constant 0.000000e+00 : f32
    %58 = vector.broadcast %cst_25 : f32 to vector<8x128xf32>
    %59 = arith.maximumf %57, %58 : vector<8x128xf32>
    %c0_26 = arith.constant 0 : index
    %c0_27 = arith.constant 0 : index
    %60 = vector.load %arg4[%c0_26, %c0_27] : memref<128x4xf32, #tpu.memory_space<vmem>>, vector<128x4xf32>
    %cst_28 = arith.constant dense<0.000000e+00> : vector<8x4xf32>
    %61 = tpu.matmul %59, %60, %cst_28 {dimension_numbers = #tpu.dot_dimension_numbers<[1], [0], [0], [1], [0, 0, 1, 1], [], []>} : vector<8x128xf32>, vector<128x4xf32>, vector<8x4xf32> -> vector<8x4xf32>
    %62 = vector.broadcast %7 : vector<1x4xf32> to vector<8x4xf32>
    %63 = arith.addf %61, %62 : vector<8x4xf32>
    %64 = math.tanh %63 : vector<8x4xf32>
    %c0_29 = arith.constant 0 : index
    %c0_30 = arith.constant 0 : index
    %65 = vector.load %arg6[%c0_29, %c0_30] : memref<8x4xf32, #tpu.memory_space<vmem>>, vector<8x4xf32>
    tpu.vector_store %arg6[%c0_29, %c0_30], %64 {strides = array<i32>} : memref<8x4xf32, #tpu.memory_space<vmem>>, vector<8x4xf32>,
    return
  }
  func.func @transform_0(%arg0: i32) -> (i32, i32) {
    %c0_i32 = arith.constant 0 : i32
    %c0_i32_0 = arith.constant 0 : i32
    return %arg0, %c0_i32 : i32, i32
  }
  func.func @transform_1(%arg0: i32) -> (i32, i32) {
    %c0_i32 = arith.constant 0 : i32
    %c0_i32_0 = arith.constant 0 : i32
    %c0_i32_1 = arith.constant 0 : i32
    return %c0_i32, %c0_i32_0 : i32, i32
  }
  func.func @transform_2(%arg0: i32) -> (i32, i32) {
    %c0_i32 = arith.constant 0 : i32
    %c0_i32_0 = arith.constant 0 : i32
    %c0_i32_1 = arith.constant 0 : i32
    return %c0_i32, %c0_i32_0 : i32, i32
  }
  func.func @transform_3(%arg0: i32) -> (i32, i32) {
    %c0_i32 = arith.constant 0 : i32
    %c0_i32_0 = arith.constant 0 : i32
    %c0_i32_1 = arith.constant 0 : i32
    return %c0_i32, %c0_i32_0 : i32, i32
  }
  func.func @transform_4(%arg0: i32) -> (i32, i32) {
    %c0_i32 = arith.constant 0 : i32
    %c0_i32_0 = arith.constant 0 : i32
    %c0_i32_1 = arith.constant 0 : i32
    return %c0_i32, %c0_i32_0 : i32, i32
  }
  func.func @transform_5(%arg0: i32) -> (i32, i32) {
    %c0_i32 = arith.constant 0 : i32
    %c0_i32_0 = arith.constant 0 : i32
    return %arg0, %c0_i32 : i32, i32
  }
}

</mosaic_0001>

<llo_original>
// kernel: actor_forward.1
$region0: #{actor_forward.1}
  #allocation0 [shape = 'u32[]', space=smem, size = 0x4, offset = 0x4, fixed_abs, tag = 'smem constant byte address 0x4 - core index']
  #allocation1 [shape = 'u32[144,128]{1,0:T(1,128)}', space=vmem, size = 0x12000, scoped, tag = 'internal scratch']
  %s0 = inlined_call_operand.vmem [shape: f32[8,32], index: 0, kind: input, shape index: {}]
  %s1 = inlined_call_operand.hbm [shape: f32[32,128], index: 1, kind: input, shape index: {}]
  %s2 = inlined_call_operand.vmem [shape: f32[128,128], index: 2, kind: input, shape index: {}]
  %s3 = inlined_call_operand.vmem [shape: f32[128,4], index: 3, kind: input, shape index: {}]
  %s4 = inlined_call_operand.hbm [shape: f32[8,128], index: 4, kind: input, shape index: {}]
  %s5 = inlined_call_operand.vmem [shape: f32[8,4], index: 5, kind: output, shape index: {}]
  %s6 = sld [smem:[#allocation0]]
  $region38: #{actor_forward.1} parent=0
    _
  %s8 = ssub.s32 1, %s6
  %s9 = scalar_select 0, %s8, %s6
  $region1: #{actor_forward.1} parent=0
    #allocation2 [shape = 'u8[16384]{0}', space=vmem, size = 0x4000, scoped, tag = 'input window, operand 1, single buffered']
    #allocation3 [shape = 's32[1]{0}', space=sflag, size = 0x4, scoped, tag = 'scoped memory for actor_forward.1']
    #allocation4 [shape = 'u8[4096]{0}', space=vmem, size = 0x1000, scoped, tag = 'input window, operand 4, single buffered']
    #allocation5 [shape = 's32[1]{0}', space=sflag, size = 0x4, scoped, tag = 'scoped memory for actor_forward.1']
    %10 = vsyncpa [#allocation3], 0
    %11 = vsyncpa [#allocation5], 0
    // Predicated region
    $region2: #{actor_forward.1} parent=1 // pred_check
      _
    $region3: #{actor_forward.1} parent=1 // pred_check_branch
      %13 = sbr.rel (0) target = $region5
    $region4: #{actor_forward.1} parent=1 // pred_region
      _
    $region5: #{actor_forward.1} parent=1 // pred_fallthru
      _
    // Predicated region
    $region6: #{actor_forward.1} parent=1 // pred_check
      _
    $region7: #{actor_forward.1} parent=1 // pred_check_branch
      %15 = sbr.rel (0) target = $region9
    $region8: #{actor_forward.1} parent=1 // pred_region
      %s17 = ssub.s32 512, 512
      %18 = vsyncadd [#allocation3], %s17
      %s19 = sshll.u32 [#allocation2], 4
      %s20 = int_to_ptr.vmem [resolvable:$true] %s19
      %25 = dma.hbm_to_vmem [thread:$0]  %s1, 512, %s20, [#allocation3], 128, 128, 8
    $region9: #{actor_forward.1} parent=1 // pred_fallthru
      _
    // Predicated region
    $region10: #{actor_forward.1} parent=1 // pred_check
      _
    $region11: #{actor_forward.1} parent=1 // pred_check_branch
      %27 = sbr.rel (0) target = $region13
    $region12: #{actor_forward.1} parent=1 // pred_region
      _
    $region13: #{actor_forward.1} parent=1 // pred_fallthru
      _
    // Predicated region
    $region14: #{actor_forward.1} parent=1 // pred_check
      _
    $region15: #{actor_forward.1} parent=1 // pred_check_branch
      %29 = sbr.rel (0) target = $region17
    $region16: #{actor_forward.1} parent=1 // pred_region
      _
    $region17: #{actor_forward.1} parent=1 // pred_fallthru
      _
    // Predicated region
    $region18: #{actor_forward.1} parent=1 // pred_check
      _
    $region19: #{actor_forward.1} parent=1 // pred_check_branch
      %31 = sbr.rel (0) target = $region21
    $region20: #{actor_forward.1} parent=1 // pred_region
      %s33 = ssub.s32 128, 128
      %34 = vsyncadd [#allocation5], %s33
      %s36 = sshll.u32 [#allocation4], 4
      %s37 = int_to_ptr.vmem [resolvable:$true] %s36
      %39 = dma.hbm_to_vmem [thread:$0]  %s4, 128, %s37, [#allocation5]
    $region21: #{actor_forward.1} parent=1 // pred_fallthru
      _
    // Predicated region
    $region22: #{actor_forward.1} parent=1 // pred_check
      _
    $region23: #{actor_forward.1} parent=1 // pred_check_branch
      %41 = sbr.rel (0) target = $region25
    $region24: #{actor_forward.1} parent=1 // pred_region
      %42 = dma.done [#allocation3], 512
    $region25: #{actor_forward.1} parent=1 // pred_fallthru
      _
    // Predicated region
    $region26: #{actor_forward.1} parent=1 // pred_check
      _
    $region27: #{actor_forward.1} parent=1 // pred_check_branch
      %44 = sbr.rel (0) target = $region29
    $region28: #{actor_forward.1} parent=1 // pred_region
      %45 = dma.done [#allocation5], 128
    $region29: #{actor_forward.1} parent=1 // pred_fallthru
      _
    %v46 = vld [vmem:[%s0] sm:$0xff]
    %v47 = vld [vmem:[#allocation4] sm:$0x1]
    %v48 = vld [vmem:[#allocation4 + $0x1] sm:$0x1]
    %v49 = vld [vmem:[#allocation4 + $0x2] sm:$0x1]
    %v50 = vld [vmem:[#allocation4 + $0x3] sm:$0x1]
    %v51 = vld [vmem:[#allocation4 + $0x4] sm:$0x1]
    %v52 = vld [vmem:[#allocation4 + $0x5] sm:$0x1]
    %v53 = vld [vmem:[#allocation4 + $0x6] sm:$0x1]
    %v54 = vld [vmem:[#allocation2] sm:$0xff]
    %v55 = vld [vmem:[#allocation2 + $0x8] sm:$0xff]
    %v56 = vld [vmem:[#allocation2 + $0x10] sm:$0xff]
    %v57 = vld [vmem:[#allocation2 + $0x18] sm:$0xff]
    %v58 = vlaneseq
    %v59 = vshrl.u32 %v58, 7
    %v60 = vsub.s32 0, %v59
    %v61 = vrot.slane %v47, %v60
    %vm62 = vcmask 261120
    %v64 = vsel %vm62, %v46, 0
    %66 = vmatprep.subr.mxu0 0.0
    %67 = vmatpush1.msra.mxu0 %v54
    %68 = vmatprep.subr.mxu0 0.0
    %69 = vmatpush1.msra.mxu0 %v55
    %70 = vmatprep.subr.mxu0 0.0
    %71 = vmatpush1.msra.mxu0 %v56
    %72 = vmatprep.subr.mxu0 0.0
    %73 = vmatpush1.msra.mxu0 %v57
    %74 = vmatprep.subr.mxu0 0.0
    %75 = vmatpush1.msra.mxu0 0.0
    %76 = vmatprep.subr.mxu0 0.0
    %77 = vmatpush1.msra.mxu0 0.0
    %78 = vmatprep.subr.mxu0 0.0
    %79 = vmatpush1.msra.mxu0 0.0
    %80 = vmatprep.subr.mxu0 0.0
    %81 = vmatpush1.msra.mxu0 0.0
    %82 = vmatprep.subr.mxu0 0.0
    %83 = vmatpush1.msra.mxu0 0.0
    %84 = vmatprep.subr.mxu0 0.0
    %85 = vmatpush1.msra.mxu0 0.0
    %86 = vmatprep.subr.mxu0 0.0
    %87 = vmatpush1.msra.mxu0 0.0
    %88 = vmatprep.subr.mxu0 0.0
    %89 = vmatpush1.msra.mxu0 0.0
    %90 = vmatprep.subr.mxu0 0.0
    %91 = vmatpush1.msra.mxu0 0.0
    %92 = vmatprep.subr.mxu0 0.0
    %93 = vmatpush1.msra.mxu0 0.0
    %94 = vmatprep.subr.mxu0 0.0
    %95 = vmatpush1.msra.mxu0 0.0
    %96 = vmatprep.subr.mxu0 0.0
    %97 = vmatpush1.msra.mxu0 0.0
    %98 = vmatprep.subr.mxu0 0.0
    %99 = vmatpush1.msra.mxu0 0.0
    %100 = vmatprep.subr.mxu0 0.0
    %101 = vmatpush1.msra.mxu0 0.0
    %102 = vmatprep.subr.mxu0 0.0
    %103 = vmatpush1.msra.mxu0 0.0
    %104 = vmatprep.subr.mxu0 0.0
    %105 = vmatpush1.msra.mxu0 0.0
    %106 = vmatprep.subr.mxu0 0.0
    %107 = vmatpush1.msra.mxu0 0.0
    %108 = vmatprep.subr.mxu0 0.0
    %109 = vmatpush1.msra.mxu0 0.0
    %110 = vmatprep.subr.mxu0 0.0
    %111 = vmatpush1.msra.mxu0 0.0
    %112 = vmatprep.subr.mxu0 0.0
    %113 = vmatpush1.msra.mxu0 0.0
    %114 = vmatprep.subr.mxu0 0.0
    %115 = vmatpush1.msra.mxu0 0.0
    %116 = vmatprep.subr.mxu0 0.0
    %117 = vmatpush1.msra.mxu0 0.0
    %118 = vmatprep.subr.mxu0 0.0
    %119 = vmatpush1.msra.mxu0 0.0
    %120 = vmatprep.subr.mxu0 0.0
    %121 = vmatpush1.msra.mxu0 0.0
    %122 = vmatprep.subr.mxu0 0.0
    %123 = vmatpush1.msra.mxu0 0.0
    %124 = vmatprep.subr.mxu0 0.0
    %125 = vmatpush1.msra.mxu0 0.0
    %126 = vmatprep.subr.mxu0 0.0
    %127 = vmatpush1.msra.mxu0 0.0
    %128 = vmatprep.subr.mxu0 0.0
    %129 = vmatpush1.msra.mxu0 0.0
    %130 = vmatprep.mubr.f32.mxu0 0.0
    %131 = vmatmul.mubr.f32.gmra.mrb[0].mxu0 %v64
    %v132 = vpop.f32.mrb[0].mxu0
    %v133 = vadd.f32 %v61, %v132
    %v134 = vpop.f32.mrb[0].mxu0
    %135 = vdwg.mxu0
    %136 = vadd.xlane.f32.xlu0 %v133
    %v137 = vpop.xlane.xlu0 %136
    %v138 = vrcp.pop 128.0
    %v139 = vmul.f32 %v137, %v138
    %v140 = vsub.f32 %v133, %v139
    %v141 = vmul.f32 %v140, %v140
    %142 = vadd.xlane.f32.xlu0 %v141
    %v143 = vpop.xlane.xlu0 %142
    %v144 = vmul.f32 %v143, %v138
    %v145 = vadd.f32 %v144, 1e-05
    %v146 = vrsqrt.pop %v145
    %v147 = vmul.f32 %v140, %v146
    %v148 = vlaneseq
    %v149 = vshrl.u32 %v148, 7
    %v150 = vsub.s32 0, %v149
    %v151 = vrot.slane %v48, %v150
    %v152 = vmul.f32 %v147, %v151
    %v153 = vlaneseq
    %v154 = vshrl.u32 %v153, 7
    %v155 = vsub.s32 0, %v154
    %v156 = vrot.slane %v49, %v155
    %v157 = vadd.f32 %v152, %v156
    %v158 = vmax.f32 %v157, 0.0
    %v159 = vld [vmem:[%s2] sm:$0xff]
    %v160 = vld [vmem:[%s2 + $0x8] sm:$0xff]
    %v161 = vld [vmem:[%s2 + $0x10] sm:$0xff]
    %v162 = vld [vmem:[%s2 + $0x18] sm:$0xff]
    %v163 = vld [vmem:[%s2 + $0x20] sm:$0xff]
    %v164 = vld [vmem:[%s2 + $0x28] sm:$0xff]
    %v165 = vld [vmem:[%s2 + $0x30] sm:$0xff]
    %v166 = vld [vmem:[%s2 + $0x38] sm:$0xff]
    %v167 = vld [vmem:[%s2 + $0x40] sm:$0xff]
    %v168 = vld [vmem:[%s2 + $0x48] sm:$0xff]
    %v169 = vld [vmem:[%s2 + $0x50] sm:$0xff]
    %v170 = vld [vmem:[%s2 + $0x58] sm:$0xff]
    %v171 = vld [vmem:[%s2 + $0x60] sm:$0xff]
    %v172 = vld [vmem:[%s2 + $0x68] sm:$0xff]
    %v173 = vld [vmem:[%s2 + $0x70] sm:$0xff]
    %v174 = vld [vmem:[%s2 + $0x78] sm:$0xff]
    %v175 = vlaneseq
    %v176 = vshrl.u32 %v175, 7
    %v177 = vsub.s32 0, %v176
    %v178 = vrot.slane %v50, %v177
    %179 = vmatprep.subr.mxu0 0.0
    %180 = vmatpush1.msra.mxu0 %v159
    %181 = vmatprep.subr.mxu0 0.0
    %182 = vmatpush1.msra.mxu0 %v160
    %183 = vmatprep.subr.mxu0 0.0
    %184 = vmatpush1.msra.mxu0 %v161
    %185 = vmatprep.subr.mxu0 0.0
    %186 = vmatpush1.msra.mxu0 %v162
    %187 = vmatprep.subr.mxu0 0.0
    %188 = vmatpush1.msra.mxu0 %v163
    %189 = vmatprep.subr.mxu0 0.0
    %190 = vmatpush1.msra.mxu0 %v164
    %191 = vmatprep.subr.mxu0 0.0
    %192 = vmatpush1.msra.mxu0 %v165
    %193 = vmatprep.subr.mxu0 0.0
    %194 = vmatpush1.msra.mxu0 %v166
    %195 = vmatprep.subr.mxu0 0.0
    %196 = vmatpush1.msra.mxu0 %v167
    %197 = vmatprep.subr.mxu0 0.0
    %198 = vmatpush1.msra.mxu0 %v168
    %199 = vmatprep.subr.mxu0 0.0
    %200 = vmatpush1.msra.mxu0 %v169
    %201 = vmatprep.subr.mxu0 0.0
    %202 = vmatpush1.msra.mxu0 %v170
    %203 = vmatprep.subr.mxu0 0.0
    %204 = vmatpush1.msra.mxu0 %v171
    %205 = vmatprep.subr.mxu0 0.0
    %206 = vmatpush1.msra.mxu0 %v172
    %207 = vmatprep.subr.mxu0 0.0
    %208 = vmatpush1.msra.mxu0 %v173
    %209 = vmatprep.subr.mxu0 0.0
    %210 = vmatpush1.msra.mxu0 %v174
    %211 = vmatprep.subr.mxu0 0.0
    %212 = vmatpush1.msra.mxu0 0.0
    %213 = vmatprep.subr.mxu0 0.0
    %214 = vmatpush1.msra.mxu0 0.0
    %215 = vmatprep.subr.mxu0 0.0
    %216 = vmatpush1.msra.mxu0 0.0
    %217 = vmatprep.subr.mxu0 0.0
    %218 = vmatpush1.msra.mxu0 0.0
    %219 = vmatprep.subr.mxu0 0.0
    %220 = vmatpush1.msra.mxu0 0.0
    %221 = vmatprep.subr.mxu0 0.0
    %222 = vmatpush1.msra.mxu0 0.0
    %223 = vmatprep.subr.mxu0 0.0
    %224 = vmatpush1.msra.mxu0 0.0
    %225 = vmatprep.subr.mxu0 0.0
    %226 = vmatpush1.msra.mxu0 0.0
    %227 = vmatprep.subr.mxu0 0.0
    %228 = vmatpush1.msra.mxu0 0.0
    %229 = vmatprep.subr.mxu0 0.0
    %230 = vmatpush1.msra.mxu0 0.0
    %231 = vmatprep.subr.mxu0 0.0
    %232 = vmatpush1.msra.mxu0 0.0
    %233 = vmatprep.subr.mxu0 0.0
    %234 = vmatpush1.msra.mxu0 0.0
    %235 = vmatprep.subr.mxu0 0.0
    %236 = vmatpush1.msra.mxu0 0.0
    %237 = vmatprep.subr.mxu0 0.0
    %238 = vmatpush1.msra.mxu0 0.0
    %239 = vmatprep.subr.mxu0 0.0
    %240 = vmatpush1.msra.mxu0 0.0
    %241 = vmatprep.subr.mxu0 0.0
    %242 = vmatpush1.msra.mxu0 0.0
    %243 = vmatprep.mubr.f32.mxu0 0.0
    %244 = vmatmul.mubr.f32.gmra.mrb[0].mxu0 %v158
    %v245 = vpop.f32.mrb[0].mxu0
    %v246 = vadd.f32 %v178, %v245
    %v247 = vpop.f32.mrb[0].mxu0
    %248 = vdwg.mxu0
    %249 = vadd.xlane.f32.xlu0 %v246
    %v250 = vpop.xlane.xlu0 %249
    %v251 = vmul.f32 %v250, %v138
    %v252 = vsub.f32 %v246, %v251
    %v253 = vmul.f32 %v252, %v252
    %254 = vadd.xlane.f32.xlu0 %v253
    %v255 = vpop.xlane.xlu0 %254
    %v256 = vmul.f32 %v255, %v138
    %v257 = vadd.f32 %v256, 1e-05
    %v258 = vrsqrt.pop %v257
    %v259 = vmul.f32 %v252, %v258
    %v260 = vlaneseq
    %v261 = vshrl.u32 %v260, 7
    %v262 = vsub.s32 0, %v261
    %v263 = vrot.slane %v51, %v262
    %v264 = vmul.f32 %v259, %v263
    %v265 = vlaneseq
    %v266 = vshrl.u32 %v265, 7
    %v267 = vsub.s32 0, %v266
    %v268 = vrot.slane %v52, %v267
    %v269 = vadd.f32 %v264, %v268
    %v270 = vmax.f32 %v269, 0.0
    %v271 = vld [vmem:[%s3] sm:$0xff]
    %v272 = vld [vmem:[%s3 + $0x8] sm:$0xff]
    %v273 = vld [vmem:[%s3 + $0x10] sm:$0xff]
    %v274 = vld [vmem:[%s3 + $0x18] sm:$0xff]
    %v275 = vld [vmem:[%s3 + $0x20] sm:$0xff]
    %v276 = vld [vmem:[%s3 + $0x28] sm:$0xff]
    %v277 = vld [vmem:[%s3 + $0x30] sm:$0xff]
    %v278 = vld [vmem:[%s3 + $0x38] sm:$0xff]
    %v279 = vld [vmem:[%s3 + $0x40] sm:$0xff]
    %v280 = vld [vmem:[%s3 + $0x48] sm:$0xff]
    %v281 = vld [vmem:[%s3 + $0x50] sm:$0xff]
    %v282 = vld [vmem:[%s3 + $0x58] sm:$0xff]
    %v283 = vld [vmem:[%s3 + $0x60] sm:$0xff]
    %v284 = vld [vmem:[%s3 + $0x68] sm:$0xff]
    %v285 = vld [vmem:[%s3 + $0x70] sm:$0xff]
    %v286 = vld [vmem:[%s3 + $0x78] sm:$0xff]
    %v287 = vlaneseq
    %v288 = vshrl.u32 %v287, 7
    %v289 = vsub.s32 0, %v288
    %v290 = vrot.slane %v53, %v289
    %291 = vmatprep.subr.mxu0 0.0
    %292 = vmatpush1.msra.mxu0 %v271
    %293 = vmatprep.subr.mxu0 0.0
    %294 = vmatpush1.msra.mxu0 %v272
    %295 = vmatprep.subr.mxu0 0.0
    %296 = vmatpush1.msra.mxu0 %v273
    %297 = vmatprep.subr.mxu0 0.0
    %298 = vmatpush1.msra.mxu0 %v274
    %299 = vmatprep.subr.mxu0 0.0
    %300 = vmatpush1.msra.mxu0 %v275
    %301 = vmatprep.subr.mxu0 0.0
    %302 = vmatpush1.msra.mxu0 %v276
    %303 = vmatprep.subr.mxu0 0.0
    %304 = vmatpush1.msra.mxu0 %v277
    %305 = vmatprep.subr.mxu0 0.0
    %306 = vmatpush1.msra.mxu0 %v278
    %307 = vmatprep.subr.mxu0 0.0
    %308 = vmatpush1.msra.mxu0 %v279
    %309 = vmatprep.subr.mxu0 0.0
    %310 = vmatpush1.msra.mxu0 %v280
    %311 = vmatprep.subr.mxu0 0.0
    %312 = vmatpush1.msra.mxu0 %v281
    %313 = vmatprep.subr.mxu0 0.0
    %314 = vmatpush1.msra.mxu0 %v282
    %315 = vmatprep.subr.mxu0 0.0
    %316 = vmatpush1.msra.mxu0 %v283
    %317 = vmatprep.subr.mxu0 0.0
    %318 = vmatpush1.msra.mxu0 %v284
    %319 = vmatprep.subr.mxu0 0.0
    %320 = vmatpush1.msra.mxu0 %v285
    %321 = vmatprep.subr.mxu0 0.0
    %322 = vmatpush1.msra.mxu0 %v286
    %323 = vmatprep.subr.mxu0 0.0
    %324 = vmatpush1.msra.mxu0 0.0
    %325 = vmatprep.subr.mxu0 0.0
    %326 = vmatpush1.msra.mxu0 0.0
    %327 = vmatprep.subr.mxu0 0.0
    %328 = vmatpush1.msra.mxu0 0.0
    %329 = vmatprep.subr.mxu0 0.0
    %330 = vmatpush1.msra.mxu0 0.0
    %331 = vmatprep.subr.mxu0 0.0
    %332 = vmatpush1.msra.mxu0 0.0
    %333 = vmatprep.subr.mxu0 0.0
    %334 = vmatpush1.msra.mxu0 0.0
    %335 = vmatprep.subr.mxu0 0.0
    %336 = vmatpush1.msra.mxu0 0.0
    %337 = vmatprep.subr.mxu0 0.0
    %338 = vmatpush1.msra.mxu0 0.0
    %339 = vmatprep.subr.mxu0 0.0
    %340 = vmatpush1.msra.mxu0 0.0
    %341 = vmatprep.subr.mxu0 0.0
    %342 = vmatpush1.msra.mxu0 0.0
    %343 = vmatprep.subr.mxu0 0.0
    %344 = vmatpush1.msra.mxu0 0.0
    %345 = vmatprep.subr.mxu0 0.0
    %346 = vmatpush1.msra.mxu0 0.0
    %347 = vmatprep.subr.mxu0 0.0
    %348 = vmatpush1.msra.mxu0 0.0
    %349 = vmatprep.subr.mxu0 0.0
    %350 = vmatpush1.msra.mxu0 0.0
    %351 = vmatprep.subr.mxu0 0.0
    %352 = vmatpush1.msra.mxu0 0.0
    %353 = vmatprep.subr.mxu0 0.0
    %354 = vmatpush1.msra.mxu0 0.0
    %355 = vmatprep.mubr.f32.mxu0 0.0
    %356 = vmatmul.mubr.f32.gmra.mrb[0].mxu0 %v270
    %v357 = vpop.f32.mrb[0].mxu0
    %v358 = vadd.f32 %v290, %v357
    %v359 = vpop.f32.mrb[0].mxu0
    %360 = vdwg.mxu0
    %v361 = vtanh.pop %v358
    %vm362 = vcmask 31744
    %363 = vst.msk [vmem:[%s5] sm:$0xff] %vm362, %v361
    // Predicated region
    $region30: #{actor_forward.1} parent=1 // pred_check
      _
    $region31: #{actor_forward.1} parent=1 // pred_check_branch
      %365 = sbr.rel (0) target = $region33
    $region32: #{actor_forward.1} parent=1 // pred_region
      _
    $region33: #{actor_forward.1} parent=1 // pred_fallthru
      _
    // Predicated region
    $region34: #{actor_forward.1} parent=1 // pred_check
      _
    $region35: #{actor_forward.1} parent=1 // pred_check_branch
      %367 = sbr.rel (0) target = $region37
    $region36: #{actor_forward.1} parent=1 // pred_region
      _
    $region37: #{actor_forward.1} parent=1 // pred_fallthru
      _
    %368 = vsyncpa [#allocation3], 1
    %369 = vsyncpa [#allocation5], 1

</llo_original>
